<compile_context>
chip_gen: v7x
topology: tpu7x:2x2x1
jax: 0.10.0
libtpu: 0.0.40
codegen_flags: <defaults>
</compile_context>

<pallas_src>
import jax
import jax.numpy as jnp
from jax.experimental import pallas as pl
from jax.experimental.pallas import tpu as pltpu


def _round_up(a: int, b: int) -> int:
    return (a + b - 1) // b * b


def ffnn_kernel(x_ref, w1_ref, b1_ref, w2_ref, b2_ref, o_ref, acc_ref):
    # x_ref:  (tm, dim_p)   in-dtype     w1_ref: (dim_p, tk)   bf16
    # b1_ref: (1, tk)       f32          w2_ref: (tk, dim_p)   bf16
    # b2_ref: (1, dim_p)    f32          o_ref:  (tm, dim_p)   in-dtype
    # acc_ref:(tm, dim_p)   f32 scratch (y accumulator over the inter axis)
    k = pl.program_id(1)

    @pl.when(k == 0)
    def _():
        acc_ref[...] = jnp.zeros_like(acc_ref)

    x = x_ref[...]
    h = jnp.dot(x.astype(jnp.bfloat16), w1_ref[...],
                preferred_element_type=jnp.float32) + b1_ref[...]
    h = jnp.tanh(h)                                   # f32 tanh -> EUP slot
    acc_ref[...] += jnp.dot(h.astype(jnp.bfloat16), w2_ref[...],
                            preferred_element_type=jnp.float32)

    @pl.when(k == pl.num_programs(1) - 1)
    def _():
        # dropout (eval mode) is identity; residual add in f32.
        y = acc_ref[...] + b2_ref[...] + x.astype(jnp.float32)
        o_ref[...] = y.astype(o_ref.dtype)


def _vmem_cap_bytes() -> int:
    """Generation-aware usable VMEM (capacity minus headroom)."""
    try:
        info = pltpu.get_tpu_info()
        cap = int(getattr(info, "vmem_capacity_bytes", 64 << 20))
    except Exception:
        cap = 64 << 20  # conservative: v7x per-TC VMEM
    return max(32 << 20, cap - (16 << 20))


def _step_vmem_bytes(tm: int, tk: int, dim_p: int, x_bytes: int, out_bytes: int) -> int:
    """Per-grid-step VMEM footprint, including compiler intermediates."""
    # double-buffered streamed weight slabs + bias slices (bf16 weights, f32 biases)
    w_stream = 2 * (dim_p * tk * 2 + tk * dim_p * 2 + tk * 4 + dim_p * 4)
    # double-buffered x / out row tiles
    xo_tiles = 2 * tm * dim_p * (x_bytes + out_bytes)
    # intermediates: h f32 + h bf16 cast + x bf16 cast + f32 accumulator scratch
    inter = tm * tk * (4 + 2) + tm * dim_p * 2 + tm * dim_p * 4
    return w_stream + xo_tiles + inter


def make_ffnn(w1, b1, w2, b2, *, tm_target: int = 512, tk_target: int = 2048):
    """Build an FFNN forward fn. w1:[dim,inter], b1:[inter], w2:[inter,dim], b2:[dim].

    Computes tanh(x @ w1 + b1) @ w2 + b2 + x (dropout in eval mode).
    Weight padding / bf16 cast is done ONCE here, not per forward call.
    """
    dim, inter = w1.shape
    assert w2.shape == (inter, dim) and b1.shape == (inter,) and b2.shape == (dim,)

    dim_p = _round_up(dim, 128)
    tk = min(_round_up(inter, 128), _round_up(tk_target, 128))
    inter_p = _round_up(inter, tk)
    vmem_cap = _vmem_cap_bytes()

    bf16, f32 = jnp.bfloat16, jnp.float32
    # Zero-padding is exact: padded rows/cols of the weights contribute nothing.
    w1p = jnp.zeros((dim_p, inter_p), bf16).at[:dim, :inter].set(w1.astype(bf16))
    w2p = jnp.zeros((inter_p, dim_p), bf16).at[:inter, :dim].set(w2.astype(bf16))
    b1p = jnp.zeros((1, inter_p), f32).at[0, :inter].set(b1.astype(f32))
    b2p = jnp.zeros((1, dim_p), f32).at[0, :dim].set(b2.astype(f32))

    @jax.jit
    def fwd(x, w1p, b1p, w2p, b2p):
        N, d = x.shape
        assert d == dim, "input feature dim mismatch"
        x_bytes = jnp.dtype(x.dtype).itemsize
        out_bytes = x_bytes

        # Row tile: big enough to amortize per-step pipeline overhead, small enough
        # to fit VMEM with the streamed weight slabs; clamp toward N to avoid
        # padded-row MXU waste for awkward N.
        tm = max(8, min(_round_up(tm_target, 8), _round_up(N, 8)))
        while tm > 64 and _step_vmem_bytes(tm, tk, dim_p, x_bytes, out_bytes) > vmem_cap:
            tm = _round_up(tm // 2, 8)
        n_p = _round_up(N, tm)

        aligned = (n_p == N) and (dim_p == dim)
        if aligned:
            xp = x                                     # fast path: no pad copy
        else:
            xp = jnp.zeros((n_p, dim_p), x.dtype).at[:N, :dim].set(x)

        grid = (n_p // tm, inter_p // tk)

        flops = 2 * n_p * dim_p * inter_p * 2          # two matmuls
        transcendentals = n_p * inter_p                # tanh
        bytes_accessed = (n_p * dim_p * (x_bytes + out_bytes)
                          + (w1p.size + w2p.size) * 2
                          + (b1p.size + b2p.size) * 4)

        step_bytes = _step_vmem_bytes(tm, tk, dim_p, x_bytes, out_bytes)
        vmem_limit = min(max(int(1.3 * step_bytes) + (8 << 20), 16 << 20), vmem_cap)

        out_p = pl.pallas_call(
            ffnn_kernel,
            out_shape=jax.ShapeDtypeStruct((n_p, dim_p), x.dtype),
            grid_spec=pltpu.PrefetchScalarGridSpec(
                num_scalar_prefetch=0,
                grid=grid,
                in_specs=[
                    pl.BlockSpec((tm, dim_p), lambda i, k: (i, 0)),   # x (same block over k)
                    pl.BlockSpec((dim_p, tk), lambda i, k: (0, k)),   # w1 k-slab (streamed)
                    pl.BlockSpec((1, tk), lambda i, k: (0, k)),       # b1 k-slab
                    pl.BlockSpec((tk, dim_p), lambda i, k: (k, 0)),   # w2 k-slab (streamed)
                    pl.BlockSpec((1, dim_p), lambda i, k: (0, 0)),    # b2
                ],
                out_specs=pl.BlockSpec((tm, dim_p), lambda i, k: (i, 0)),
                scratch_shapes=[pltpu.VMEM((tm, dim_p), jnp.float32)],
            ),
            compiler_params=pltpu.CompilerParams(
                dimension_semantics=("parallel", "arbitrary"),
                vmem_limit_bytes=vmem_limit,
            ),
            cost_estimate=pl.CostEstimate(
                flops=flops,
                transcendentals=transcendentals,
                bytes_accessed=bytes_accessed,
            ),
        )(xp, w1p, b1p, w2p, b2p)

        if aligned:
            return out_p
        return out_p[:N, :dim]

    return lambda x: fwd(x, w1p, b1p, w2p, b2p)


def ffnn_reference(x, w1, b1, w2, b2):
    h = jnp.tanh(x @ w1 + b1)
    y = h @ w2 + b2
    return y + x


if __name__ == "__main__":
    key = jax.random.PRNGKey(0)

    def run_case(N, dim, tk_target):
        inter = 4 * dim
        ks = jax.random.split(jax.random.fold_in(key, N * 1000 + dim), 5)
        x = jax.random.normal(ks[0], (N, dim), dtype=jnp.float32)
        # PyTorch nn.Linear stores W as (out, in); generate (out, in) then transpose
        # so the kernel computes x @ W^T + b exactly like F.linear.
        w1 = (jax.random.normal(ks[1], (inter, dim), dtype=jnp.float32) * 0.05).T
        b1 = jax.random.normal(ks[2], (inter,), dtype=jnp.float32) * 0.05
        w2 = (jax.random.normal(ks[3], (dim, inter), dtype=jnp.float32) * 0.05).T
        b2 = jax.random.normal(ks[4], (dim,), dtype=jnp.float32) * 0.05

        fwd = make_ffnn(w1, b1, w2, b2, tk_target=tk_target)
        out = jax.block_until_ready(fwd(x))
        ref = ffnn_reference(x, w1, b1, w2, b2)
        assert out.shape == (N, dim)
        # bf16 matmul inputs (f32 accumulation) vs f32 reference -> relaxed tolerance.
        assert jnp.allclose(out, ref, atol=2e-2, rtol=2e-2), f"mismatch N={N} dim={dim}"

    # Small shapes consistent with the module (dim -> 4*dim -> dim, residual add):
    run_case(N=8, dim=32, tk_target=2048)    # padded path, single k-step
    run_case(N=24, dim=128, tk_target=256)   # aligned fast path, 2 k-steps (accumulator)

    print("KERNEL_OK")
</pallas_src>

<mosaic_0001>
module attributes {stable_mosaic.version = 11 : i64} {
  func.func @ffnn_kernel(%arg0: i32, %arg1: i32, %arg2: memref<8x128xf32, #tpu.memory_space<vmem>>, %arg3: memref<128x128xbf16, #tpu.memory_space<vmem>>, %arg4: memref<1x128xf32, #tpu.memory_space<vmem>>, %arg5: memref<128x128xbf16, #tpu.memory_space<vmem>>, %arg6: memref<1x128xf32, #tpu.memory_space<vmem>>, %arg7: memref<8x128xf32, #tpu.memory_space<vmem>>, %arg8: memref<8x128xf32, #tpu.memory_space<vmem>>) attributes {dimension_semantics = [#tpu.dimension_semantics<parallel>, #tpu.dimension_semantics<arbitrary>], iteration_bounds = array<i64: 1, 1>, scalar_prefetch = 0 : i64, scratch_operands = 1 : i64, tpu.core_type = #tpu.core_type<tc>, window_params = [{transform_indices = @transform_0, window_bounds = array<i64: 8, 128>}, {transform_indices = @transform_1, window_bounds = array<i64: 128, 128>}, {transform_indices = @transform_2, window_bounds = array<i64: 1, 128>}, {transform_indices = @transform_3, window_bounds = array<i64: 128, 128>}, {pipeline_mode = #tpu.pipeline_mode<synchronous>, transform_indices = @transform_4, window_bounds = array<i64: 1, 128>}, {transform_indices = @transform_5, window_bounds = array<i64: 8, 128>}]} {
    %c0_i32 = arith.constant 0 : i32
    %0 = arith.cmpi eq, %arg1, %c0_i32 : i32
    %1 = arith.extui %0 : i1 to i32
    %c0_i32_0 = arith.constant 0 : i32
    %2 = arith.cmpi ne, %1, %c0_i32_0 : i32
    scf.if %2 {
      %cst_15 = arith.constant 0.000000e+00 : f32
      %20 = vector.broadcast %cst_15 : f32 to vector<8x128xf32>
      %c0_16 = arith.constant 0 : index
      %c0_17 = arith.constant 0 : index
      %21 = vector.load %arg8[%c0_16, %c0_17] : memref<8x128xf32, #tpu.memory_space<vmem>>, vector<8x128xf32>
      tpu.vector_store %arg8[%c0_16, %c0_17], %20 {strides = array<i32>} : memref<8x128xf32, #tpu.memory_space<vmem>>, vector<8x128xf32>,
    } else {
    }
    %c0 = arith.constant 0 : index
    %c0_1 = arith.constant 0 : index
    %3 = vector.load %arg2[%c0, %c0_1] : memref<8x128xf32, #tpu.memory_space<vmem>>, vector<8x128xf32>
    %4 = arith.truncf %3 : vector<8x128xf32> to vector<8x128xbf16>
    %c0_2 = arith.constant 0 : index
    %c0_3 = arith.constant 0 : index
    %5 = vector.load %arg3[%c0_2, %c0_3] : memref<128x128xbf16, #tpu.memory_space<vmem>>, vector<128x128xbf16>
    %cst = arith.constant dense<0.000000e+00> : vector<8x128xf32>
    %6 = tpu.matmul %4, %5, %cst {dimension_numbers = #tpu.dot_dimension_numbers<[1], [0], [0], [1], [0, 0, 1, 1], [], []>} : vector<8x128xbf16>, vector<128x128xbf16>, vector<8x128xf32> -> vector<8x128xf32>
    %c0_4 = arith.constant 0 : index
    %c0_5 = arith.constant 0 : index
    %7 = vector.load %arg4[%c0_4, %c0_5] : memref<1x128xf32, #tpu.memory_space<vmem>>, vector<1x128xf32>
    %8 = vector.broadcast %7 : vector<1x128xf32> to vector<8x128xf32>
    %9 = arith.addf %6, %8 : vector<8x128xf32>
    %10 = math.tanh %9 : vector<8x128xf32>
    %c0_6 = arith.constant 0 : index
    %c0_7 = arith.constant 0 : index
    %11 = vector.load %arg8[%c0_6, %c0_7] : memref<8x128xf32, #tpu.memory_space<vmem>>, vector<8x128xf32>
    %12 = arith.truncf %10 : vector<8x128xf32> to vector<8x128xbf16>
    %c0_8 = arith.constant 0 : index
    %c0_9 = arith.constant 0 : index
    %13 = vector.load %arg5[%c0_8, %c0_9] : memref<128x128xbf16, #tpu.memory_space<vmem>>, vector<128x128xbf16>
    %cst_10 = arith.constant dense<0.000000e+00> : vector<8x128xf32>
    %14 = tpu.matmul %12, %13, %cst_10 {dimension_numbers = #tpu.dot_dimension_numbers<[1], [0], [0], [1], [0, 0, 1, 1], [], []>} : vector<8x128xbf16>, vector<128x128xbf16>, vector<8x128xf32> -> vector<8x128xf32>
    %15 = arith.addf %11, %14 : vector<8x128xf32>
    %c0_11 = arith.constant 0 : index
    %c0_12 = arith.constant 0 : index
    %16 = vector.load %arg8[%c0_11, %c0_12] : memref<8x128xf32, #tpu.memory_space<vmem>>, vector<8x128xf32>
    tpu.vector_store %arg8[%c0_11, %c0_12], %15 {strides = array<i32>} : memref<8x128xf32, #tpu.memory_space<vmem>>, vector<8x128xf32>,
    %c0_i32_13 = arith.constant 0 : i32
    %17 = arith.cmpi eq, %arg1, %c0_i32_13 : i32
    %18 = arith.extui %17 : i1 to i32
    %c0_i32_14 = arith.constant 0 : i32
    %19 = arith.cmpi ne, %18, %c0_i32_14 : i32
    scf.if %19 {
      %c0_15 = arith.constant 0 : index
      %c0_16 = arith.constant 0 : index
      %20 = vector.load %arg8[%c0_15, %c0_16] : memref<8x128xf32, #tpu.memory_space<vmem>>, vector<8x128xf32>
      %c0_17 = arith.constant 0 : index
      %c0_18 = arith.constant 0 : index
      %21 = vector.load %arg6[%c0_17, %c0_18] : memref<1x128xf32, #tpu.memory_space<vmem>>, vector<1x128xf32>
      %22 = vector.broadcast %21 : vector<1x128xf32> to vector<8x128xf32>
      %23 = arith.addf %20, %22 : vector<8x128xf32>
      %24 = arith.addf %23, %3 : vector<8x128xf32>
      %c0_19 = arith.constant 0 : index
      %c0_20 = arith.constant 0 : index
      %25 = vector.load %arg7[%c0_19, %c0_20] : memref<8x128xf32, #tpu.memory_space<vmem>>, vector<8x128xf32>
      tpu.vector_store %arg7[%c0_19, %c0_20], %24 {strides = array<i32>} : memref<8x128xf32, #tpu.memory_space<vmem>>, vector<8x128xf32>,
    } else {
    }
    return
  }
  func.func @transform_0(%arg0: i32, %arg1: i32) -> (i32, i32) {
    %c0_i32 = arith.constant 0 : i32
    %c0_i32_0 = arith.constant 0 : i32
    return %arg0, %c0_i32 : i32, i32
  }
  func.func @transform_1(%arg0: i32, %arg1: i32) -> (i32, i32) {
    %c0_i32 = arith.constant 0 : i32
    %c0_i32_0 = arith.constant 0 : i32
    return %c0_i32, %arg1 : i32, i32
  }
  func.func @transform_2(%arg0: i32, %arg1: i32) -> (i32, i32) {
    %c0_i32 = arith.constant 0 : i32
    %c0_i32_0 = arith.constant 0 : i32
    return %c0_i32, %arg1 : i32, i32
  }
  func.func @transform_3(%arg0: i32, %arg1: i32) -> (i32, i32) {
    %c0_i32 = arith.constant 0 : i32
    %c0_i32_0 = arith.constant 0 : i32
    return %arg1, %c0_i32 : i32, i32
  }
  func.func @transform_4(%arg0: i32, %arg1: i32) -> (i32, i32) {
    %c0_i32 = arith.constant 0 : i32
    %c0_i32_0 = arith.constant 0 : i32
    %c0_i32_1 = arith.constant 0 : i32
    return %c0_i32, %c0_i32_0 : i32, i32
  }
  func.func @transform_5(%arg0: i32, %arg1: i32) -> (i32, i32) {
    %c0_i32 = arith.constant 0 : i32
    %c0_i32_0 = arith.constant 0 : i32
    return %arg0, %c0_i32 : i32, i32
  }
}

</mosaic_0001>

<llo_original>
// kernel: fwd.1
$region0: #{fwd.1}
  #allocation0 [shape = 'u32[]', space=smem, size = 0x4, offset = 0x4, fixed_abs, tag = 'smem constant byte address 0x4 - core index']
  #allocation1 [shape = 'u32[144,128]{1,0:T(1,128)}', space=vmem, size = 0x12000, scoped, tag = 'internal scratch']
  #allocation2 [shape = 'f32[8,128]{1,0:T(8,128)}', space=vmem, size = 0x1000, scoped, tag = 'scratch operand']
  %s0 = inlined_call_operand.vmem [shape: f32[8,128], index: 0, kind: input, shape index: {}]
  %s1 = inlined_call_operand.hbm [shape: bf16[128,128], index: 1, kind: input, shape index: {}]
  %s2 = inlined_call_operand.vmem [shape: f32[1,128], index: 2, kind: input, shape index: {}]
  %s3 = inlined_call_operand.hbm [shape: bf16[128,128], index: 3, kind: input, shape index: {}]
  %s4 = inlined_call_operand.vmem [shape: f32[1,128], index: 4, kind: input, shape index: {}]
  %s5 = inlined_call_operand.hbm [shape: f32[8,128], index: 5, kind: output, shape index: {}]
  %s6 = sld [smem:[#allocation0]]
  $region46: #{fwd.1} parent=0
    _
  %s8 = ssub.s32 1, %s6
  %s9 = scalar_select 0, %s8, %s6
  $region1: #{fwd.1} parent=0
    #allocation3 [shape = 'u8[32768]{0}', space=vmem, size = 0x8000, scoped, tag = 'input window, operand 1, single buffered']
    #allocation4 [shape = 's32[1]{0}', space=sflag, size = 0x4, scoped, tag = 'scoped memory for fwd.1']
    #allocation5 [shape = 's32[1]{0}', space=sflag, size = 0x4, scoped, tag = 'scoped memory for fwd.1']
    #allocation6 [shape = 'u8[32768]{0}', space=vmem, size = 0x8000, scoped, tag = 'input window, operand 3, single buffered']
    #allocation7 [shape = 's32[1]{0}', space=sflag, size = 0x4, scoped, tag = 'scoped memory for fwd.1']
    #allocation8 [shape = 'u8[4096]{0}', space=vmem, size = 0x1000, scoped, tag = 'output window, operand 0, single buffered']
    %10 = vsyncpa [#allocation4], 0
    %11 = vsyncpa [#allocation7], 0
    %12 = vsyncpa [#allocation5], 0
    // Predicated region
    $region2: #{fwd.1} parent=1 // pred_check
      _
    $region3: #{fwd.1} parent=1 // pred_check_branch
      %14 = sbr.rel (0) target = $region5
    $region4: #{fwd.1} parent=1 // pred_region
      _
    $region5: #{fwd.1} parent=1 // pred_fallthru
      _
    // Predicated region
    $region6: #{fwd.1} parent=1 // pred_check
      _
    $region7: #{fwd.1} parent=1 // pred_check_branch
      %16 = sbr.rel (0) target = $region9
    $region8: #{fwd.1} parent=1 // pred_region
      %s18 = ssub.s32 1024, 1024
      %19 = vsyncadd [#allocation4], %s18
      %s20 = sshll.u32 [#allocation3], 4
      %s21 = int_to_ptr.vmem [resolvable:$true] %s20
      %26 = dma.hbm_to_vmem [thread:$0]  %s1, 1024, %s21, [#allocation4], 64, 64, 4
    $region9: #{fwd.1} parent=1 // pred_fallthru
      _
    // Predicated region
    $region10: #{fwd.1} parent=1 // pred_check
      _
    $region11: #{fwd.1} parent=1 // pred_check_branch
      %28 = sbr.rel (0) target = $region13
    $region12: #{fwd.1} parent=1 // pred_region
      _
    $region13: #{fwd.1} parent=1 // pred_fallthru
      _
    // Predicated region
    $region14: #{fwd.1} parent=1 // pred_check
      _
    $region15: #{fwd.1} parent=1 // pred_check_branch
      %30 = sbr.rel (0) target = $region17
    $region16: #{fwd.1} parent=1 // pred_region
      %s32 = ssub.s32 1024, 1024
      %33 = vsyncadd [#allocation7], %s32
      %s34 = sshll.u32 [#allocation6], 4
      %s35 = int_to_ptr.vmem [resolvable:$true] %s34
      %40 = dma.hbm_to_vmem [thread:$0]  %s3, 1024, %s35, [#allocation7], 64, 64, 4
    $region17: #{fwd.1} parent=1 // pred_fallthru
      _
    // Predicated region
    $region18: #{fwd.1} parent=1 // pred_check
      _
    $region19: #{fwd.1} parent=1 // pred_check_branch
      %42 = sbr.rel (0) target = $region21
    $region20: #{fwd.1} parent=1 // pred_region
      _
    $region21: #{fwd.1} parent=1 // pred_fallthru
      _
    // Predicated region
    $region22: #{fwd.1} parent=1 // pred_check
      _
    $region23: #{fwd.1} parent=1 // pred_check_branch
      %44 = sbr.rel (0) target = $region25
    $region24: #{fwd.1} parent=1 // pred_region
      %45 = dma.done [#allocation4], 1024
    $region25: #{fwd.1} parent=1 // pred_fallthru
      _
    // Predicated region
    $region26: #{fwd.1} parent=1 // pred_check
      _
    $region27: #{fwd.1} parent=1 // pred_check_branch
      %47 = sbr.rel (0) target = $region29
    $region28: #{fwd.1} parent=1 // pred_region
      %48 = dma.done [#allocation7], 1024
    $region29: #{fwd.1} parent=1 // pred_fallthru
      _
    %p50 = scmp.eq.s32.totalorder 0, 0
    // Predicated region
    $region30: #{fwd.1} parent=1 // pred_check
      %p51 = pneg %p50
    $region31: #{fwd.1} parent=1 // pred_check_branch
      %53 = sbr.rel (%p51) target = $region33
    $region32: #{fwd.1} parent=1 // pred_region
      %54 = vst [vmem:[#allocation2] sm:$0xff] 0.0
    $region33: #{fwd.1} parent=1 // pred_fallthru
      _
    %v55 = vld [vmem:[%s0] sm:$0xff]
    %v56 = vpack.c.bf16 %v55, %v55
    %v57 = vld [vmem:[#allocation3] sm:$0xf]
    %v58 = vld [vmem:[#allocation3 + $0x4] sm:$0xf]
    %v59 = vld [vmem:[#allocation3 + $0x8] sm:$0xf]
    %v60 = vld [vmem:[#allocation3 + $0xc] sm:$0xf]
    %v61 = vld [vmem:[#allocation3 + $0x10] sm:$0xf]
    %v62 = vld [vmem:[#allocation3 + $0x14] sm:$0xf]
    %v63 = vld [vmem:[#allocation3 + $0x18] sm:$0xf]
    %v64 = vld [vmem:[#allocation3 + $0x1c] sm:$0xf]
    %v65 = vld [vmem:[#allocation3 + $0x20] sm:$0xf]
    %v66 = vld [vmem:[#allocation3 + $0x24] sm:$0xf]
    %v67 = vld [vmem:[#allocation3 + $0x28] sm:$0xf]
    %v68 = vld [vmem:[#allocation3 + $0x2c] sm:$0xf]
    %v69 = vld [vmem:[#allocation3 + $0x30] sm:$0xf]
    %v70 = vld [vmem:[#allocation3 + $0x34] sm:$0xf]
    %v71 = vld [vmem:[#allocation3 + $0x38] sm:$0xf]
    %v72 = vld [vmem:[#allocation3 + $0x3c] sm:$0xf]
    %v73 = vld [vmem:[%s2] sm:$0x1]
    %v75 = vlaneseq
    %v76 = vshrl.u32 %v75, 7
    %v77 = vsub.s32 0, %v76
    %v78 = vrot.slane %v73, %v77
    %v96 = vunpack.c.l.b16 %v57
    %v97 = vunpack.c.l.b16 %v58
    %v98 = vunpack.c.l.b16 %v59
    %v99 = vunpack.c.l.b16 %v60
    %v100 = vunpack.c.l.b16 %v61
    %v101 = vunpack.c.l.b16 %v62
    %v102 = vunpack.c.l.b16 %v63
    %v103 = vunpack.c.l.b16 %v64
    %v104 = vunpack.c.l.b16 %v65
    %v105 = vunpack.c.l.b16 %v66
    %v106 = vunpack.c.l.b16 %v67
    %v107 = vunpack.c.l.b16 %v68
    %v108 = vunpack.c.l.b16 %v69
    %v109 = vunpack.c.l.b16 %v70
    %v110 = vunpack.c.l.b16 %v71
    %v111 = vunpack.c.l.b16 %v72
    %v112 = vpack.c.b16 %v97, %v96
    %v113 = vpack.c.b16 %v99, %v98
    %v114 = vpack.c.b16 %v101, %v100
    %v115 = vpack.c.b16 %v103, %v102
    %v116 = vpack.c.b16 %v105, %v104
    %v117 = vpack.c.b16 %v107, %v106
    %v118 = vpack.c.b16 %v109, %v108
    %v119 = vpack.c.b16 %v111, %v110
    %128 = vmatprep.subr.bf16.mxu0 0
    %129 = vmatpush1.bf16.msra.mxu0 %v112
    %130 = vmatprep.subr.bf16.mxu0 0
    %131 = vmatpush1.bf16.msra.mxu0 %v113
    %132 = vmatprep.subr.bf16.mxu0 0
    %133 = vmatpush1.bf16.msra.mxu0 %v114
    %134 = vmatprep.subr.bf16.mxu0 0
    %135 = vmatpush1.bf16.msra.mxu0 %v115
    %136 = vmatprep.subr.bf16.mxu0 0
    %137 = vmatpush1.bf16.msra.mxu0 %v116
    %138 = vmatprep.subr.bf16.mxu0 0
    %139 = vmatpush1.bf16.msra.mxu0 %v117
    %140 = vmatprep.subr.bf16.mxu0 0
    %141 = vmatpush1.bf16.msra.mxu0 %v118
    %142 = vmatprep.subr.bf16.mxu0 0
    %143 = vmatpush1.bf16.msra.mxu0 %v119
    %144 = vmatprep.subr.bf16.mxu0 0
    %145 = vmatpush1.bf16.msra.mxu0 0
    %146 = vmatprep.subr.bf16.mxu0 0
    %147 = vmatpush1.bf16.msra.mxu0 0
    %148 = vmatprep.subr.bf16.mxu0 0
    %149 = vmatpush1.bf16.msra.mxu0 0
    %150 = vmatprep.subr.bf16.mxu0 0
    %151 = vmatpush1.bf16.msra.mxu0 0
    %152 = vmatprep.subr.bf16.mxu0 0
    %153 = vmatpush1.bf16.msra.mxu0 0
    %154 = vmatprep.subr.bf16.mxu0 0
    %155 = vmatpush1.bf16.msra.mxu0 0
    %156 = vmatprep.subr.bf16.mxu0 0
    %157 = vmatpush1.bf16.msra.mxu0 0
    %158 = vmatprep.subr.bf16.mxu0 0
    %159 = vmatpush1.bf16.msra.mxu0 0
    %160 = vmatprep.mubr.bf16.mxu0 0
    %161 = vmatmul.mubr.bf16.gmra.mrb[0].mxu0 %v56
    %v162 = vpop.f32.mrb[0].mxu0
    %v163 = vadd.f32 %v78, %v162
    %v164 = vpop.f32.mrb[0].mxu0
    %v165 = vpop.f32.mrb[0].mxu0
    %v166 = vpop.f32.mrb[0].mxu0
    %167 = vdwg.mxu0
    %v168 = vtanh.pop %v163
    %v169 = vld [vmem:[#allocation2] sm:$0xff]
    %v170 = vpack.c.bf16 %v168, %v168
    %v171 = vld [vmem:[#allocation6] sm:$0xf]
    %v172 = vld [vmem:[#allocation6 + $0x4] sm:$0xf]
    %v173 = vld [vmem:[#allocation6 + $0x8] sm:$0xf]
    %v174 = vld [vmem:[#allocation6 + $0xc] sm:$0xf]
    %v175 = vld [vmem:[#allocation6 + $0x10] sm:$0xf]
    %v176 = vld [vmem:[#allocation6 + $0x14] sm:$0xf]
    %v177 = vld [vmem:[#allocation6 + $0x18] sm:$0xf]
    %v178 = vld [vmem:[#allocation6 + $0x1c] sm:$0xf]
    %v179 = vld [vmem:[#allocation6 + $0x20] sm:$0xf]
    %v180 = vld [vmem:[#allocation6 + $0x24] sm:$0xf]
    %v181 = vld [vmem:[#allocation6 + $0x28] sm:$0xf]
    %v182 = vld [vmem:[#allocation6 + $0x2c] sm:$0xf]
    %v183 = vld [vmem:[#allocation6 + $0x30] sm:$0xf]
    %v184 = vld [vmem:[#allocation6 + $0x34] sm:$0xf]
    %v185 = vld [vmem:[#allocation6 + $0x38] sm:$0xf]
    %v186 = vld [vmem:[#allocation6 + $0x3c] sm:$0xf]
    %v203 = vunpack.c.l.b16 %v171
    %v204 = vunpack.c.l.b16 %v172
    %v205 = vunpack.c.l.b16 %v173
    %v206 = vunpack.c.l.b16 %v174
    %v207 = vunpack.c.l.b16 %v175
    %v208 = vunpack.c.l.b16 %v176
    %v209 = vunpack.c.l.b16 %v177
    %v210 = vunpack.c.l.b16 %v178
    %v211 = vunpack.c.l.b16 %v179
    %v212 = vunpack.c.l.b16 %v180
    %v213 = vunpack.c.l.b16 %v181
    %v214 = vunpack.c.l.b16 %v182
    %v215 = vunpack.c.l.b16 %v183
    %v216 = vunpack.c.l.b16 %v184
    %v217 = vunpack.c.l.b16 %v185
    %v218 = vunpack.c.l.b16 %v186
    %v219 = vpack.c.b16 %v204, %v203
    %v220 = vpack.c.b16 %v206, %v205
    %v221 = vpack.c.b16 %v208, %v207
    %v222 = vpack.c.b16 %v210, %v209
    %v223 = vpack.c.b16 %v212, %v211
    %v224 = vpack.c.b16 %v214, %v213
    %v225 = vpack.c.b16 %v216, %v215
    %v226 = vpack.c.b16 %v218, %v217
    %235 = vmatprep.subr.bf16.mxu0 0
    %236 = vmatpush1.bf16.msra.mxu0 %v219
    %237 = vmatprep.subr.bf16.mxu0 0
    %238 = vmatpush1.bf16.msra.mxu0 %v220
    %239 = vmatprep.subr.bf16.mxu0 0
    %240 = vmatpush1.bf16.msra.mxu0 %v221
    %241 = vmatprep.subr.bf16.mxu0 0
    %242 = vmatpush1.bf16.msra.mxu0 %v222
    %243 = vmatprep.subr.bf16.mxu0 0
    %244 = vmatpush1.bf16.msra.mxu0 %v223
    %245 = vmatprep.subr.bf16.mxu0 0
    %246 = vmatpush1.bf16.msra.mxu0 %v224
    %247 = vmatprep.subr.bf16.mxu0 0
    %248 = vmatpush1.bf16.msra.mxu0 %v225
    %249 = vmatprep.subr.bf16.mxu0 0
    %250 = vmatpush1.bf16.msra.mxu0 %v226
    %251 = vmatprep.subr.bf16.mxu0 0
    %252 = vmatpush1.bf16.msra.mxu0 0
    %253 = vmatprep.subr.bf16.mxu0 0
    %254 = vmatpush1.bf16.msra.mxu0 0
    %255 = vmatprep.subr.bf16.mxu0 0
    %256 = vmatpush1.bf16.msra.mxu0 0
    %257 = vmatprep.subr.bf16.mxu0 0
    %258 = vmatpush1.bf16.msra.mxu0 0
    %259 = vmatprep.subr.bf16.mxu0 0
    %260 = vmatpush1.bf16.msra.mxu0 0
    %261 = vmatprep.subr.bf16.mxu0 0
    %262 = vmatpush1.bf16.msra.mxu0 0
    %263 = vmatprep.subr.bf16.mxu0 0
    %264 = vmatpush1.bf16.msra.mxu0 0
    %265 = vmatprep.subr.bf16.mxu0 0
    %266 = vmatpush1.bf16.msra.mxu0 0
    %267 = vmatprep.mubr.bf16.mxu0 0
    %268 = vmatmul.mubr.bf16.gmra.mrb[0].mxu0 %v170
    %v269 = vpop.f32.mrb[0].mxu0
    %v270 = vadd.f32 0.0, %v269
    %v271 = vpop.f32.mrb[0].mxu0
    %v272 = vpop.f32.mrb[0].mxu0
    %v273 = vpop.f32.mrb[0].mxu0
    %274 = vdwg.mxu0
    %v275 = vadd.f32 %v169, %v270
    %276 = vst [vmem:[#allocation2] sm:$0xff] %v275
    // Predicated region
    $region34: #{fwd.1} parent=1 // pred_check
      %p277 = pneg %p50
    $region35: #{fwd.1} parent=1 // pred_check_branch
      %279 = sbr.rel (%p277) target = $region37
    $region36: #{fwd.1} parent=1 // pred_region
      %v280 = vld [vmem:[#allocation2] sm:$0xff]
      %v281 = vld [vmem:[%s4] sm:$0x1]
      %v283 = vlaneseq
      %v284 = vshrl.u32 %v283, 7
      %v285 = vsub.s32 0, %v284
      %v286 = vrot.slane %v281, %v285
      %v288 = vadd.f32 %v280, %v286
      %v289 = vadd.f32 %v288, %v55
      %290 = vst [vmem:[#allocation8] sm:$0xff] %v289
    $region37: #{fwd.1} parent=1 // pred_fallthru
      _
    // Predicated region
    $region38: #{fwd.1} parent=1 // pred_check
      _
    $region39: #{fwd.1} parent=1 // pred_check_branch
      %292 = sbr.rel (0) target = $region41
    $region40: #{fwd.1} parent=1 // pred_region
      %s294 = ssub.s32 128, 128
      %295 = vsyncadd [#allocation5], %s294
      %s297 = sshll.u32 [#allocation8], 4
      %s298 = int_to_ptr.vmem [resolvable:$true] %s297
      %300 = dma.vmem_to_hbm [thread:$0]  %s298, 128, %s5, [#allocation5]
    $region41: #{fwd.1} parent=1 // pred_fallthru
      _
    // Predicated region
    $region42: #{fwd.1} parent=1 // pred_check
      _
    $region43: #{fwd.1} parent=1 // pred_check_branch
      %302 = sbr.rel (0) target = $region45
    $region44: #{fwd.1} parent=1 // pred_region
      %303 = dma.done [#allocation5], 128
    $region45: #{fwd.1} parent=1 // pred_fallthru
      _
    %304 = vsyncpa [#allocation4], 1
    %305 = vsyncpa [#allocation7], 1
    %306 = vsyncpa [#allocation5], 1

</llo_original>
